<compile_context>
chip_gen: v5e
topology: v5e:2x2
jax: 0.10.0
libtpu: 0.0.40
codegen_flags: <defaults>
</compile_context>

<pallas_src>
import functools

import jax
import jax.numpy as jnp
import numpy as np
from jax.experimental import pallas as pl
from jax.experimental.pallas import tpu as pltpu


def _round_up(x, m):
    return (x + m - 1) // m * m


def _fc_l2norm_kernel(x_ref, w_ref, b_ref, o_ref):
    # x_ref: (TM, K)  w_ref: (K, N)  b_ref: (1, N)  o_ref: (TM, N)
    feats = jnp.dot(x_ref[...], w_ref[...], preferred_element_type=jnp.float32)
    feats = feats + b_ref[...].astype(jnp.float32)
    # l2norm along last dim: x / (sqrt(sum(x^2)) + eps)
    norm = jnp.sqrt(jnp.sum(feats * feats, axis=-1, keepdims=True)) + 1e-8
    o_ref[...] = (feats * pl.reciprocal(norm, approx=True)).astype(o_ref.dtype)


def _fc_only_kernel(x_ref, w_ref, b_ref, o_ref):
    # no_imgnorm=True path: just the Linear.
    feats = jnp.dot(x_ref[...], w_ref[...], preferred_element_type=jnp.float32)
    feats = feats + b_ref[...].astype(jnp.float32)
    o_ref[...] = feats.astype(o_ref.dtype)


@functools.partial(jax.jit, static_argnames=("no_imgnorm", "block_rows"))
def encoder_image_precomp(images, weight, bias, no_imgnorm=False, block_rows=256):
    """images: (..., img_dim); weight: (embed_size, img_dim); bias: (embed_size,)."""
    img_dim = images.shape[-1]
    embed_size = weight.shape[0]
    lead_shape = images.shape[:-1]

    x2d = images.reshape(-1, img_dim)
    n_rows = x2d.shape[0]

    # Lane-dense feature dims (multiples of 128).
    k_pad = _round_up(img_dim, 128)
    n_pad = _round_up(embed_size, 128)

    # Row tile: sublane-aligned (multiple of 8); 256 default (MXU-friendly on
    # v6e/v7x) but clamped for small inputs. Rows padded to a tile multiple.
    tm = min(block_rows, _round_up(n_rows, 8))
    m_pad = _round_up(n_rows, tm)

    # Zero padding is exact: zero K columns contribute nothing to the dot and
    # zero N columns (zero weight + zero bias) don't perturb the row L2 norm.
    x_p = jnp.pad(x2d, ((0, m_pad - n_rows), (0, k_pad - img_dim)))
    w_t = jnp.pad(weight.T, ((0, k_pad - img_dim), (0, n_pad - embed_size)))
    b2d = jnp.pad(bias.reshape(1, embed_size), ((0, 0), (0, n_pad - embed_size)))

    kernel = _fc_only_kernel if no_imgnorm else _fc_l2norm_kernel

    # VMEM budget: resident weight + double-buffered x/out tiles + bias,
    # clamped to stay inside v7x's 64 MiB physical VMEM.
    x_isz = jnp.dtype(images.dtype).itemsize
    est = (k_pad * n_pad * jnp.dtype(w_t.dtype).itemsize
           + 2 * tm * k_pad * x_isz
           + 2 * tm * n_pad * x_isz
           + 2 * n_pad * 4)
    vmem_limit = int(min(64 << 20, max(32 << 20, 2 * est)))

    out = pl.pallas_call(
        kernel,
        out_shape=jax.ShapeDtypeStruct((m_pad, n_pad), images.dtype),
        grid_spec=pltpu.PrefetchScalarGridSpec(
            num_scalar_prefetch=0,
            grid=(m_pad // tm,),
            in_specs=[
                pl.BlockSpec((tm, k_pad), lambda i: (i, 0)),     # x: row-tiled
                pl.BlockSpec((k_pad, n_pad), lambda i: (0, 0)),  # W: resident
                pl.BlockSpec((1, n_pad), lambda i: (0, 0)),      # bias: resident
            ],
            out_specs=pl.BlockSpec((tm, n_pad), lambda i: (i, 0)),
        ),
        compiler_params=pltpu.CompilerParams(
            dimension_semantics=("parallel",),   # independent rows -> megacore
            vmem_limit_bytes=vmem_limit,
        ),
    )(x_p, w_t, b2d)

    out = out[:n_rows, :embed_size]
    return out.reshape(*lead_shape, embed_size)


def init_params(key, img_dim, embed_size):
    """Xavier-uniform init for fc.weight, zeros for fc.bias (as in init_weights)."""
    r = np.sqrt(6.0) / np.sqrt(img_dim + embed_size)
    weight = jax.random.uniform(
        key, (embed_size, img_dim), dtype=jnp.float32, minval=-r, maxval=r
    )
    bias = jnp.zeros((embed_size,), dtype=jnp.float32)
    return weight, bias


if __name__ == "__main__":
    img_dim = 32
    embed_size = 64
    batch, seq = 2, 8

    key = jax.random.PRNGKey(0)
    k_w, k_x = jax.random.split(key)

    weight, bias = init_params(k_w, img_dim, embed_size)
    images = jax.random.normal(k_x, (batch, seq, img_dim), dtype=jnp.float32)

    # l2norm path
    feats = encoder_image_precomp(images, weight, bias, no_imgnorm=False)
    feats = jax.block_until_ready(feats)

    ref_fc = images @ weight.T + bias
    ref = ref_fc / (jnp.sqrt(jnp.sum(ref_fc * ref_fc, axis=-1, keepdims=True)) + 1e-8)
    # approx reciprocal (EUP) in the epilogue -> modestly relaxed tolerance
    np.testing.assert_allclose(np.asarray(feats), np.asarray(ref), rtol=2e-3, atol=2e-3)
    assert feats.shape == (batch, seq, embed_size)

    # no_imgnorm path (plain Linear)
    feats_fc = encoder_image_precomp(images, weight, bias, no_imgnorm=True)
    feats_fc = jax.block_until_ready(feats_fc)
    np.testing.assert_allclose(np.asarray(feats_fc), np.asarray(ref_fc),
                               rtol=1e-4, atol=1e-4)

    print("KERNEL_OK")
</pallas_src>

<mosaic_0001>
module attributes {stable_mosaic.version = 11 : i64} {
  func.func @_fc_l2norm_kernel(%arg0: i32, %arg1: memref<16x128xf32, #tpu.memory_space<vmem>>, %arg2: memref<128x128xf32, #tpu.memory_space<vmem>>, %arg3: memref<1x128xf32, #tpu.memory_space<vmem>>, %arg4: memref<16x128xf32, #tpu.memory_space<vmem>>) attributes {dimension_semantics = [#tpu.dimension_semantics<parallel>], iteration_bounds = array<i64: 1>, scalar_prefetch = 0 : i64, scratch_operands = 0 : i64, tpu.core_type = #tpu.core_type<tc>, window_params = [{transform_indices = @transform_0, window_bounds = array<i64: 16, 128>}, {pipeline_mode = #tpu.pipeline_mode<synchronous>, transform_indices = @transform_1, window_bounds = array<i64: 128, 128>}, {pipeline_mode = #tpu.pipeline_mode<synchronous>, transform_indices = @transform_2, window_bounds = array<i64: 1, 128>}, {transform_indices = @transform_3, window_bounds = array<i64: 16, 128>}]} {
    %c0 = arith.constant 0 : index
    %c0_0 = arith.constant 0 : index
    %0 = vector.load %arg1[%c0, %c0_0] : memref<16x128xf32, #tpu.memory_space<vmem>>, vector<16x128xf32>
    %c0_1 = arith.constant 0 : index
    %c0_2 = arith.constant 0 : index
    %1 = vector.load %arg2[%c0_1, %c0_2] : memref<128x128xf32, #tpu.memory_space<vmem>>, vector<128x128xf32>
    %cst = arith.constant dense<0.000000e+00> : vector<16x128xf32>
    %2 = tpu.matmul %0, %1, %cst {dimension_numbers = #tpu.dot_dimension_numbers<[1], [0], [0], [1], [0, 0, 1, 1], [], []>} : vector<16x128xf32>, vector<128x128xf32>, vector<16x128xf32> -> vector<16x128xf32>
    %c0_3 = arith.constant 0 : index
    %c0_4 = arith.constant 0 : index
    %3 = vector.load %arg3[%c0_3, %c0_4] : memref<1x128xf32, #tpu.memory_space<vmem>>, vector<1x128xf32>
    %4 = vector.broadcast %3 : vector<1x128xf32> to vector<16x128xf32>
    %5 = arith.addf %2, %4 : vector<16x128xf32>
    %6 = arith.mulf %5, %5 : vector<16x128xf32>
    %cst_5 = arith.constant dense<0.000000e+00> : vector<16xf32>
    %7 = vector.multi_reduction <add>, %6, %cst_5 [1] : vector<16x128xf32> to vector<16xf32>
    %8 = vector.shape_cast %7 : vector<16xf32> to vector<16x1xf32>
    %9 = math.sqrt %8 : vector<16x1xf32>
    %cst_6 = arith.constant 9.99999993E-9 : f32
    %10 = vector.broadcast %cst_6 : f32 to vector<16x1xf32>
    %11 = arith.addf %9, %10 : vector<16x1xf32>
    %12 = tpu.reciprocal %11 {approx = true} : vector<16x1xf32> -> vector<16x1xf32>
    %13 = vector.broadcast %12 : vector<16x1xf32> to vector<16x128xf32>
    %14 = arith.mulf %5, %13 : vector<16x128xf32>
    %c0_7 = arith.constant 0 : index
    %c0_8 = arith.constant 0 : index
    %15 = vector.load %arg4[%c0_7, %c0_8] : memref<16x128xf32, #tpu.memory_space<vmem>>, vector<16x128xf32>
    tpu.vector_store %arg4[%c0_7, %c0_8], %14 {strides = array<i32>} : memref<16x128xf32, #tpu.memory_space<vmem>>, vector<16x128xf32>,
    return
  }
  func.func @transform_0(%arg0: i32) -> (i32, i32) {
    %c0_i32 = arith.constant 0 : i32
    %c0_i32_0 = arith.constant 0 : i32
    return %arg0, %c0_i32 : i32, i32
  }
  func.func @transform_1(%arg0: i32) -> (i32, i32) {
    %c0_i32 = arith.constant 0 : i32
    %c0_i32_0 = arith.constant 0 : i32
    %c0_i32_1 = arith.constant 0 : i32
    return %c0_i32, %c0_i32_0 : i32, i32
  }
  func.func @transform_2(%arg0: i32) -> (i32, i32) {
    %c0_i32 = arith.constant 0 : i32
    %c0_i32_0 = arith.constant 0 : i32
    %c0_i32_1 = arith.constant 0 : i32
    return %c0_i32, %c0_i32_0 : i32, i32
  }
  func.func @transform_3(%arg0: i32) -> (i32, i32) {
    %c0_i32 = arith.constant 0 : i32
    %c0_i32_0 = arith.constant 0 : i32
    return %arg0, %c0_i32 : i32, i32
  }
}

</mosaic_0001>

<llo_original>
// kernel: encoder_image_precomp.1
$region0: #{encoder_image_precomp.1}
  #allocation0 [shape = 'u32[]', space=smem, size = 0x4, offset = 0x4, fixed_abs, tag = 'smem constant byte address 0x4 - core index']
  #allocation1 [shape = 'u32[72,128]{1,0:T(1,128)}', space=vmem, size = 0x9000, scoped, tag = 'internal scratch']
  %s0 = inlined_call_operand.vmem [shape: f32[16,128], index: 0, kind: input, shape index: {}]
  %s1 = inlined_call_operand.vmem [shape: f32[128,128], index: 1, kind: input, shape index: {}]
  %s2 = inlined_call_operand.vmem [shape: f32[1,128], index: 2, kind: input, shape index: {}]
  %s3 = inlined_call_operand.vmem [shape: f32[16,128], index: 3, kind: output, shape index: {}]
  %s4 = sld [smem:[#allocation0]]
  $region22: #{encoder_image_precomp.1} parent=0
    _
  %s6 = ssub.s32 1, %s4
  %s7 = scalar_select 0, %s6, %s4
  // Predicated region
  $region2: #{encoder_image_precomp.1} parent=0 // pred_check
    _
  $region3: #{encoder_image_precomp.1} parent=0 // pred_check_branch
    %9 = sbr.rel (0) target = $region5
  $region4: #{encoder_image_precomp.1} parent=0 // pred_region
    _
  $region5: #{encoder_image_precomp.1} parent=0 // pred_fallthru
    _
  // Predicated region
  $region6: #{encoder_image_precomp.1} parent=0 // pred_check
    _
  $region7: #{encoder_image_precomp.1} parent=0 // pred_check_branch
    %11 = sbr.rel (0) target = $region9
  $region8: #{encoder_image_precomp.1} parent=0 // pred_region
    _
  $region9: #{encoder_image_precomp.1} parent=0 // pred_fallthru
    _
  // Predicated region
  $region10: #{encoder_image_precomp.1} parent=0 // pred_check
    _
  $region11: #{encoder_image_precomp.1} parent=0 // pred_check_branch
    %13 = sbr.rel (0) target = $region13
  $region12: #{encoder_image_precomp.1} parent=0 // pred_region
    _
  $region13: #{encoder_image_precomp.1} parent=0 // pred_fallthru
    _
  %v14 = vld [vmem:[%s0] sm:$0xff]
  %v15 = vld [vmem:[%s0 + $0x8] sm:$0xff]
  %v16 = vld [vmem:[%s1] sm:$0xff]
  %v17 = vld [vmem:[%s1 + $0x8] sm:$0xff]
  %v18 = vld [vmem:[%s1 + $0x10] sm:$0xff]
  %v19 = vld [vmem:[%s1 + $0x18] sm:$0xff]
  %v20 = vld [vmem:[%s1 + $0x20] sm:$0xff]
  %v21 = vld [vmem:[%s1 + $0x28] sm:$0xff]
  %v22 = vld [vmem:[%s1 + $0x30] sm:$0xff]
  %v23 = vld [vmem:[%s1 + $0x38] sm:$0xff]
  %v24 = vld [vmem:[%s1 + $0x40] sm:$0xff]
  %v25 = vld [vmem:[%s1 + $0x48] sm:$0xff]
  %v26 = vld [vmem:[%s1 + $0x50] sm:$0xff]
  %v27 = vld [vmem:[%s1 + $0x58] sm:$0xff]
  %v28 = vld [vmem:[%s1 + $0x60] sm:$0xff]
  %v29 = vld [vmem:[%s1 + $0x68] sm:$0xff]
  %v30 = vld [vmem:[%s1 + $0x70] sm:$0xff]
  %v31 = vld [vmem:[%s1 + $0x78] sm:$0xff]
  %v32 = vld [vmem:[%s2] sm:$0x1]
  %v34 = vperm.slane %v32, 0
  %36 = vmatpush.msra.mxu0 %v31
  %37 = vmatpush.msra.mxu0 %v30
  %38 = vmatpush.msra.mxu0 %v29
  %39 = vmatpush.msra.mxu0 %v28
  %40 = vmatpush.msra.mxu0 %v27
  %41 = vmatpush.msra.mxu0 %v26
  %42 = vmatpush.msra.mxu0 %v25
  %43 = vmatpush.msra.mxu0 %v24
  %44 = vmatpush.msra.mxu0 %v23
  %45 = vmatpush.msra.mxu0 %v22
  %46 = vmatpush.msra.mxu0 %v21
  %47 = vmatpush.msra.mxu0 %v20
  %48 = vmatpush.msra.mxu0 %v19
  %49 = vmatpush.msra.mxu0 %v18
  %50 = vmatpush.msra.mxu0 %v17
  %51 = vmatpush.msra.mxu0 %v16
  %52 = vmatmul.f32.gmra.mxu0 %v14
  %v53 = vpop.f32.mrf.mxu0
  %v54 = vadd.f32 %v34, %v53
  %55 = vmatmul.f32.gmra.mxu0 %v15
  %v56 = vpop.f32.mrf.mxu0
  %v57 = vadd.f32 %v34, %v56
  %58 = vdwg.mxu0
  %v59 = vmul.f32 %v54, %v54
  %v60 = vmul.f32 %v57, %v57
  %61 = vadd.xlane.f32.xlu0 %v59
  %v62 = vpop.xlane.xlu0 %61
  %63 = vadd.xlane.f32.xlu0 %v60
  %v64 = vpop.xlane.xlu0 %63
  %v65 = vrsqrt.pop %v62
  %v66 = vmul.f32 %v65, %v62
  %v67 = vmul.f32 %v66, %v65
  %v68 = vmul.f32 0.5, %v67
  %v69 = vsub.f32 1.5, %v68
  %v70 = vmul.f32 %v65, %v69
  %v71 = vmul.f32 %v62, %v70
  %vm72 = vcmp.eq.f32.partialorder %v62, inf
  %v73 = vsel %vm72, %v62, %v71
  %vm74 = vcmp.eq.f32.partialorder %v62, 0.0
  %v75 = vand.u32 %v62, 2147483648
  %v76 = vsel %vm74, %v75, %v73
  %v77 = vrsqrt.pop %v64
  %v78 = vmul.f32 %v77, %v64
  %v79 = vmul.f32 %v78, %v77
  %v80 = vmul.f32 0.5, %v79
  %v81 = vsub.f32 1.5, %v80
  %v82 = vmul.f32 %v77, %v81
  %v83 = vmul.f32 %v64, %v82
  %vm84 = vcmp.eq.f32.partialorder %v64, inf
  %v85 = vsel %vm84, %v64, %v83
  %vm86 = vcmp.eq.f32.partialorder %v64, 0.0
  %v87 = vand.u32 %v64, 2147483648
  %v88 = vsel %vm86, %v87, %v85
  %v89 = vadd.f32 %v76, 1e-08
  %v90 = vadd.f32 %v88, 1e-08
  %v91 = vrcp.pop %v89
  %v92 = vrcp.pop %v90
  %v93 = vmul.f32 %v54, %v91
  %v94 = vmul.f32 %v57, %v92
  %95 = vst [vmem:[%s3] sm:$0xff] %v93
  %96 = vst [vmem:[%s3 + $0x8] sm:$0xff] %v94
  // Predicated region
  $region14: #{encoder_image_precomp.1} parent=0 // pred_check
    _
  $region15: #{encoder_image_precomp.1} parent=0 // pred_check_branch
    %98 = sbr.rel (0) target = $region17
  $region16: #{encoder_image_precomp.1} parent=0 // pred_region
    _
  $region17: #{encoder_image_precomp.1} parent=0 // pred_fallthru
    _
  // Predicated region
  $region18: #{encoder_image_precomp.1} parent=0 // pred_check
    _
  $region19: #{encoder_image_precomp.1} parent=0 // pred_check_branch
    %100 = sbr.rel (0) target = $region21
  $region20: #{encoder_image_precomp.1} parent=0 // pred_region
    _
  $region21: #{encoder_image_precomp.1} parent=0 // pred_fallthru
    _

</llo_original>
